<compile_context>
chip_gen: v7x
topology: tpu7x:2x2x1
jax: 0.10.0
libtpu: 0.0.40
codegen_flags: <defaults>
</compile_context>

<pallas_src>
import functools

import jax
import jax.numpy as jnp
from jax import lax
from jax.experimental import pallas as pl
from jax.experimental.pallas import tpu as pltpu


# ----------------------------------------------------------------------------
# 1-D interpolation operator rows (torch Upsample bilinear, align_corners=True).
# ----------------------------------------------------------------------------
def _interp_matrix(n_in, n_out):
    """out = M @ in, M shape (n_out, n_in)."""
    if n_in == 1:
        return jnp.ones((n_out, 1), jnp.float32)
    src = jnp.arange(n_out, dtype=jnp.float32) * (n_in - 1) / (n_out - 1)
    i0 = jnp.clip(jnp.floor(src).astype(jnp.int32), 0, n_in - 2)
    frac = src - i0.astype(jnp.float32)
    rows = jnp.arange(n_out)
    m = jnp.zeros((n_out, n_in), jnp.float32)
    m = m.at[rows, i0].add(1.0 - frac)
    m = m.at[rows, i0 + 1].add(frac)
    return m


# ----------------------------------------------------------------------------
# Fused kernel: one grid step = `bs` batch elements, packed on the sublane axis.
# All tensors are channels-first with the spatial dims flattened to H*W on lanes.
#   x1_ref    (1, bs*C1, Hin*Win)       half-res input
#   x2_ref    (1, bs*Cx, H*W)           skip connection
#   k_ref     (Hin*Win, H*W)            upsample+pad interpolation matrix (transposed)
#   wgate_ref (bs*Co, bs*(C1+Cx))       block-diag merged [wg|wx]
#   wconv_ref (bs*Co, 9*bs*Cin)         block-diag im2col 3x3 conv weight (BN scale folded)
#   vec_ref   (bs*Co, 4)                cols: [bg+bx, bn_bias, wpsi, bpsi]
#   o_ref     (1, bs*Co, H*W)
#   catp_ref  (bs*Cin, H*W + 2*halo)    VMEM scratch: concat with zero halo
# ----------------------------------------------------------------------------
def _upscale_fused_kernel(x1_ref, x2_ref, k_ref, wgate_ref, wconv_ref, vec_ref,
                          o_ref, catp_ref, *, bs, c1, cx, co, width, halo):
    hw = o_ref.shape[2]
    cin = c1 + cx

    x1 = x1_ref[0].astype(jnp.float32)                         # (bs*C1, Hin*Win)
    x2 = x2_ref[0].astype(jnp.float32)                         # (bs*Cx, H*W)

    # 1) bilinear 2x upsample (align_corners=True) + F.pad, folded into ONE matmul,
    #    batch elements packed on sublanes (M = bs*C1).
    g = jnp.dot(x1, k_ref[...], preferred_element_type=jnp.float32)        # (bs*C1, HW)

    # 2) attention gate: merged 1x1 convs as a single block-diagonal matmul.
    #    Gate input rows per batch = [g_b (C1 rows); x2_b (Cx rows)].
    gate_in = jnp.concatenate(
        [jnp.concatenate([g[b * c1:(b + 1) * c1], x2[b * cx:(b + 1) * cx]], axis=0)
         for b in range(bs)], axis=0)                                       # (bs*(C1+Cx), HW)
    hh = jnp.maximum(
        jnp.dot(wgate_ref[...], gate_in, preferred_element_type=jnp.float32)
        + vec_ref[:, 0:1], 0.0)                                             # (bs*Co, HW)

    # psi (1-wide 1x1 conv): keep it off the MXU (VPU multiply + sublane reduce).
    hpsi = hh * vec_ref[:, 2:3]                                             # * wpsi
    bpsi = vec_ref[0:1, 3:4]
    cat_parts = []
    for b in range(bs):
        psi_b = jax.nn.sigmoid(
            jnp.sum(hpsi[b * co:(b + 1) * co], axis=0, keepdims=True) + bpsi)  # (1, HW)
        cat_parts.append(x2[b * cx:(b + 1) * cx] * psi_b)   # x2_att_b
        cat_parts.append(g[b * c1:(b + 1) * c1])            # g_b
    cat = jnp.concatenate(cat_parts, axis=0)                 # (bs*Cin, HW), per-batch [x2_att; g]

    # 3) concat into the flat-spatial zero-halo scratch.  Only the halo bands are zeroed
    #    (the interior is fully overwritten every step); they make the dy=+-1 row taps of
    #    the 3x3 conv read zeros at the top/bottom image border.  halo is 128-aligned so
    #    every store below is lane-aligned.
    catp_ref[:, 0:halo] = jnp.zeros((bs * cin, halo), jnp.float32)
    catp_ref[:, halo + hw:halo + hw + halo] = jnp.zeros((bs * cin, halo), jnp.float32)
    catp_ref[:, halo:halo + hw] = cat

    # 4) 3x3 conv (padding=1, no bias) as ONE im2col matmul: the 9 lane-shifted taps are
    #    stacked on sublanes (K = 9*bs*Cin).  Column wrap at the left/right image border
    #    is killed with cheap VPU masks (depend only on dx).
    x_pos = lax.broadcasted_iota(jnp.int32, (1, hw), 1) % width
    left_ok = x_pos >= 1
    right_ok = x_pos <= width - 2
    taps = []
    for dy in range(3):
        for dx in range(3):
            s = (dy - 1) * width + (dx - 1)
            tap = catp_ref[:, halo + s:halo + s + hw]        # (bs*Cin, HW)
            if dx == 0:
                tap = jnp.where(left_ok, tap, 0.0)
            elif dx == 2:
                tap = jnp.where(right_ok, tap, 0.0)
            taps.append(tap)
    im2col = jnp.concatenate(taps, axis=0)                   # (9*bs*Cin, HW)
    y = jnp.dot(wconv_ref[...], im2col, preferred_element_type=jnp.float32)  # (bs*Co, HW)
    y = y + vec_ref[:, 1:2]                                  # folded BN bias (scale in weights)
    o_ref[0] = jnp.maximum(y, 0.0).astype(o_ref.dtype)


def _pick_batches_per_step(n, min_steps=2):
    """Largest divisor of n that still leaves >= min_steps grid steps (v7x has 2 TCs)."""
    best = 1
    for d in range(1, n + 1):
        if n % d == 0 and n // d >= min_steps:
            best = d
    return best


# ----------------------------------------------------------------------------
# Builds all constants once (off the hot path) and returns a jitted forward.
# ----------------------------------------------------------------------------
def make_upscale(params, x1_shape, x2_shape, batches_per_step=None):
    n, c1, hin, win = x1_shape
    n2, cx, h, w = x2_shape
    assert n == n2
    # F.pad fold assumes a non-negative pad (torch F.pad with negative pad would crop).
    assert h >= 2 * hin and w >= 2 * win, "skip connection smaller than upsampled x1"
    co = params["wg"].shape[0]
    cin = c1 + cx
    hw = h * w
    halo = -(-(w + 1) // 128) * 128          # >= w+1, rounded to lane tile for aligned stores

    bs = batches_per_step if batches_per_step is not None else _pick_batches_per_step(n)
    assert n % bs == 0
    steps = n // bs

    # ---- one-time constant construction (hoisted out of the per-call path) ----
    # Upsample + F.pad folded into one (Hin*Win, H*W) matrix:
    #   g[c, y*W+x] = sum_{i,j} LyPad[y,i] * LxPad[x,j] * x1[c,i,j]
    ly = _interp_matrix(hin, 2 * hin)
    lx = _interp_matrix(win, 2 * win)
    dyy, dxx = h - 2 * hin, w - 2 * win
    ly_p = jnp.zeros((h, hin), jnp.float32).at[dyy // 2:dyy // 2 + 2 * hin, :].set(ly)
    lx_p = jnp.zeros((w, win), jnp.float32).at[dxx // 2:dxx // 2 + 2 * win, :].set(lx)
    k_t = jnp.kron(ly_p, lx_p).T                              # (Hin*Win, H*W)

    eye = jnp.eye(bs, dtype=jnp.float32)

    # Merged gate weight [wg|wx], block-diagonal across packed batches.
    wgx = jnp.concatenate([params["wg"], params["wx"]], axis=1)        # (Co, C1+Cx)
    wgate = jnp.kron(eye, wgx)                                         # (bs*Co, bs*(C1+Cx))

    # 3x3 conv weight (Co,Cin,3,3) -> (9,Co,Cin), BN scale folded (conv has no bias),
    # then block-diagonal matching the tap-major / batch-grouped im2col row order.
    bn_scale = params["bn_scale"].reshape(co)
    bn_bias = params["bn_bias"].reshape(co)
    w9 = jnp.transpose(params["wconv"], (2, 3, 0, 1)).reshape(9, co, cin)
    w9 = w9 * bn_scale[None, :, None]
    wconv = jnp.einsum("koc,bB->bokBc", w9, eye).reshape(bs * co, 9 * bs * cin)

    # Remaining per-channel vectors packed into a single (bs*Co, 4) input:
    #   col 0 = bg+bx, col 1 = folded BN bias, col 2 = wpsi, col 3 = bpsi
    gate_b = jnp.tile((params["bg"] + params["bx"]).reshape(co, 1), (bs, 1))
    bnb = jnp.tile(bn_bias.reshape(co, 1), (bs, 1))
    wpsi = jnp.tile(params["wpsi"].reshape(co, 1), (bs, 1))
    bpsi = jnp.broadcast_to(params["bpsi"].reshape(1, 1), (bs * co, 1))
    vecs = jnp.concatenate([gate_b, bnb, wpsi, bpsi], axis=1)

    kern = functools.partial(_upscale_fused_kernel, bs=bs, c1=c1, cx=cx, co=co,
                             width=w, halo=halo)

    pc = pl.pallas_call(
        kern,
        out_shape=jax.ShapeDtypeStruct((steps, bs * co, hw), jnp.float32),
        grid=(steps,),
        in_specs=[
            pl.BlockSpec((1, bs * c1, hin * win), lambda b: (b, 0, 0)),
            pl.BlockSpec((1, bs * cx, hw), lambda b: (b, 0, 0)),
            pl.BlockSpec((hin * win, hw), lambda b: (0, 0)),
            pl.BlockSpec((bs * co, bs * (c1 + cx)), lambda b: (0, 0)),
            pl.BlockSpec((bs * co, 9 * bs * cin), lambda b: (0, 0)),
            pl.BlockSpec((bs * co, 4), lambda b: (0, 0)),
        ],
        out_specs=pl.BlockSpec((1, bs * co, hw), lambda b: (b, 0, 0)),
        scratch_shapes=[pltpu.VMEM((bs * cin, hw + 2 * halo), jnp.float32)],
        compiler_params=pltpu.CompilerParams(dimension_semantics=("parallel",)),
    )

    @jax.jit
    def forward(x1, x2):
        # Free row-major reshapes only — no transposes, no pads in HBM.
        x1p = x1.reshape(steps, bs * c1, hin * win)
        x2p = x2.reshape(steps, bs * cx, hw)
        out = pc(x1p, x2p, k_t, wgate, wconv, vecs)
        return out.reshape(n, co, h, w)

    return forward


# ----------------------------------------------------------------------------
# Pure-JAX reference (same math, standard XLA ops) for the correctness check.
# ----------------------------------------------------------------------------
def upscale_reference(x1, x2, params):
    n, c1, hin, win = x1.shape
    _, cx, h, w = x2.shape
    hi = jax.lax.Precision.HIGHEST
    ly = _interp_matrix(hin, 2 * hin)
    lx = _interp_matrix(win, 2 * win)
    up = jnp.einsum("yi,ncij->ncyj", ly, x1, precision=hi)
    up = jnp.einsum("xj,ncyj->ncyx", lx, up, precision=hi)
    dyy, dxx = h - up.shape[2], w - up.shape[3]
    up = jnp.pad(up, ((0, 0), (0, 0),
                      (dyy // 2, dyy - dyy // 2), (dxx // 2, dxx - dxx // 2)))
    a = jnp.einsum("oc,nchw->nohw", params["wg"], up, precision=hi) \
        + params["bg"].reshape(1, -1, 1, 1)
    b = jnp.einsum("oc,nchw->nohw", params["wx"], x2, precision=hi) \
        + params["bx"].reshape(1, -1, 1, 1)
    hh = jnp.maximum(a + b, 0.0)
    psi = jax.nn.sigmoid(
        jnp.einsum("o,nohw->nhw", params["wpsi"][:, 0], hh, precision=hi)[:, None]
        + params["bpsi"].reshape(1, 1, 1, 1))
    x2a = x2 * psi
    cat = jnp.concatenate([x2a, up], axis=1)
    y = lax.conv_general_dilated(cat, params["wconv"], (1, 1), "SAME",
                                 dimension_numbers=("NCHW", "OIHW", "NCHW"),
                                 precision=hi)
    y = y * params["bn_scale"].reshape(1, -1, 1, 1) + params["bn_bias"].reshape(1, -1, 1, 1)
    return jnp.maximum(y, 0.0)


def init_params(key, in_channels, out_channels):
    c1 = in_channels // 2          # channels of g (upsampled x1)
    cx = out_channels              # channels of x2 (f_l)
    co = out_channels
    cin = in_channels              # concat channels fed to the 3x3 conv
    ks = jax.random.split(key, 8)
    p = {
        "wg":    0.2 * jax.random.normal(ks[0], (co, c1), jnp.float32),
        "bg":    0.1 * jax.random.normal(ks[1], (co, 1), jnp.float32),
        "wx":    0.2 * jax.random.normal(ks[2], (co, cx), jnp.float32),
        "bx":    0.1 * jax.random.normal(ks[3], (co, 1), jnp.float32),
        "wpsi":  0.2 * jax.random.normal(ks[4], (co, 1), jnp.float32),
        "bpsi":  0.1 * jax.random.normal(ks[5], (1, 1), jnp.float32),
        "wconv": 0.1 * jax.random.normal(ks[6], (co, cin, 3, 3), jnp.float32),
    }
    # BatchNorm2d (eval) with deterministic affine params / running stats, folded.
    # TODO(synk): training-mode BatchNorm (batch statistics) is not implemented.
    gamma = 1.0 + 0.05 * jax.random.normal(ks[7], (co,), jnp.float32)
    beta = jnp.linspace(-0.1, 0.1, co, dtype=jnp.float32)
    r_mean = jnp.zeros((co,), jnp.float32)
    r_var = jnp.ones((co,), jnp.float32)
    eps = 1e-5
    scale = gamma / jnp.sqrt(r_var + eps)
    bias = beta - r_mean * scale
    p["bn_scale"] = scale.reshape(co, 1)
    p["bn_bias"] = bias.reshape(co, 1)
    return p


if __name__ == "__main__":
    # UpScale(in_channels=8, out_channels=4, bilinear=True)
    in_channels, out_channels = 8, 4
    key = jax.random.PRNGKey(0)
    k1, k2, kp, k3, k4 = jax.random.split(key, 5)
    params = init_params(kp, in_channels, out_channels)

    # Primary case: batch 2 -> bs=1, grid=(2,) "parallel" steps (good for v7x's 2 TCs).
    N, H, W = 2, 16, 16
    x1 = jax.random.normal(k1, (N, in_channels // 2, H // 2, W // 2), jnp.float32)
    x2 = jax.random.normal(k2, (N, out_channels, H, W), jnp.float32)
    fwd = make_upscale(params, x1.shape, x2.shape)
    out = jax.block_until_ready(fwd(x1, x2))
    ref = jax.block_until_ready(upscale_reference(x1, x2, params))
    assert out.shape == (N, out_channels, H, W)
    assert bool(jnp.all(jnp.isfinite(out)))
    err = float(jnp.max(jnp.abs(out - ref)))
    assert bool(jnp.allclose(out, ref, atol=1e-4, rtol=1e-4)), err

    # Batch-packed case: batch 4 -> bs=2 batches per step, grid=(2,) parallel steps.
    N2 = 4
    x1b = jax.random.normal(k3, (N2, in_channels // 2, H // 2, W // 2), jnp.float32)
    x2b = jax.random.normal(k4, (N2, out_channels, H, W), jnp.float32)
    fwd2 = make_upscale(params, x1b.shape, x2b.shape)
    out2 = jax.block_until_ready(fwd2(x1b, x2b))
    ref2 = jax.block_until_ready(upscale_reference(x1b, x2b, params))
    assert bool(jnp.all(jnp.isfinite(out2)))
    err2 = float(jnp.max(jnp.abs(out2 - ref2)))
    assert bool(jnp.allclose(out2, ref2, atol=1e-4, rtol=1e-4)), err2

    print("KERNEL_OK")
</pallas_src>

<mosaic_0001>
module attributes {stable_mosaic.version = 11 : i64} {
  func.func @_upscale_fused_kernel(%arg0: i32, %arg1: memref<1x4x64xf32, #tpu.memory_space<vmem>>, %arg2: memref<1x4x256xf32, #tpu.memory_space<vmem>>, %arg3: memref<64x256xf32, #tpu.memory_space<vmem>>, %arg4: memref<4x8xf32, #tpu.memory_space<vmem>>, %arg5: memref<4x72xf32, #tpu.memory_space<vmem>>, %arg6: memref<4x4xf32, #tpu.memory_space<vmem>>, %arg7: memref<1x4x256xf32, #tpu.memory_space<vmem>>, %arg8: memref<8x512xf32, #tpu.memory_space<vmem>>) attributes {dimension_semantics = [#tpu.dimension_semantics<parallel>], iteration_bounds = array<i64: 2>, scalar_prefetch = 0 : i64, scratch_operands = 1 : i64, tpu.core_type = #tpu.core_type<tc>, window_params = [{transform_indices = @transform_0, window_bounds = array<i64: 1, 4, 64>}, {transform_indices = @transform_1, window_bounds = array<i64: 1, 4, 256>}, {pipeline_mode = #tpu.pipeline_mode<synchronous>, transform_indices = @transform_2, window_bounds = array<i64: 64, 256>}, {pipeline_mode = #tpu.pipeline_mode<synchronous>, transform_indices = @transform_3, window_bounds = array<i64: 4, 8>}, {pipeline_mode = #tpu.pipeline_mode<synchronous>, transform_indices = @transform_4, window_bounds = array<i64: 4, 72>}, {pipeline_mode = #tpu.pipeline_mode<synchronous>, transform_indices = @transform_5, window_bounds = array<i64: 4, 4>}, {transform_indices = @transform_6, window_bounds = array<i64: 1, 4, 256>}]} {
    %c0 = arith.constant 0 : index
    %c0_0 = arith.constant 0 : index
    %c0_1 = arith.constant 0 : index
    %0 = vector.load %arg1[%c0, %c0_0, %c0_1] : memref<1x4x64xf32, #tpu.memory_space<vmem>>, vector<1x4x64xf32>
    %1 = vector.shape_cast %0 : vector<1x4x64xf32> to vector<4x64xf32>
    %c0_2 = arith.constant 0 : index
    %c0_3 = arith.constant 0 : index
    %c0_4 = arith.constant 0 : index
    %2 = vector.load %arg2[%c0_2, %c0_3, %c0_4] : memref<1x4x256xf32, #tpu.memory_space<vmem>>, vector<1x4x256xf32>
    %3 = vector.shape_cast %2 : vector<1x4x256xf32> to vector<4x256xf32>
    %c0_5 = arith.constant 0 : index
    %c0_6 = arith.constant 0 : index
    %4 = vector.load %arg3[%c0_5, %c0_6] : memref<64x256xf32, #tpu.memory_space<vmem>>, vector<64x256xf32>
    %cst = arith.constant dense<0.000000e+00> : vector<4x256xf32>
    %5 = tpu.matmul %1, %4, %cst {dimension_numbers = #tpu.dot_dimension_numbers<[1], [0], [0], [1], [0, 0, 1, 1], [], []>} : vector<4x64xf32>, vector<64x256xf32>, vector<4x256xf32> -> vector<4x256xf32>
    %6 = tpu.concatenate %5, %3 in 0 : vector<4x256xf32>, vector<4x256xf32> -> vector<8x256xf32>
    %c0_7 = arith.constant 0 : index
    %c0_8 = arith.constant 0 : index
    %7 = vector.load %arg4[%c0_7, %c0_8] : memref<4x8xf32, #tpu.memory_space<vmem>>, vector<4x8xf32>
    %cst_9 = arith.constant dense<0.000000e+00> : vector<4x256xf32>
    %8 = tpu.matmul %7, %6, %cst_9 {dimension_numbers = #tpu.dot_dimension_numbers<[1], [0], [0], [1], [0, 0, 1, 1], [], []>} : vector<4x8xf32>, vector<8x256xf32>, vector<4x256xf32> -> vector<4x256xf32>
    %c0_10 = arith.constant 0 : index
    %c0_11 = arith.constant 0 : index
    %9 = vector.load %arg6[%c0_10, %c0_11] : memref<4x4xf32, #tpu.memory_space<vmem>>, vector<4x1xf32>
    %10 = vector.broadcast %9 : vector<4x1xf32> to vector<4x256xf32>
    %11 = arith.addf %8, %10 : vector<4x256xf32>
    %cst_12 = arith.constant 0.000000e+00 : f32
    %12 = vector.broadcast %cst_12 : f32 to vector<4x256xf32>
    %13 = arith.maximumf %11, %12 : vector<4x256xf32>
    %c0_13 = arith.constant 0 : index
    %c2 = arith.constant 2 : index
    %14 = vector.load %arg6[%c0_13, %c2] : memref<4x4xf32, #tpu.memory_space<vmem>>, vector<4x1xf32>
    %15 = vector.broadcast %14 : vector<4x1xf32> to vector<4x256xf32>
    %16 = arith.mulf %13, %15 : vector<4x256xf32>
    %c0_14 = arith.constant 0 : index
    %c3 = arith.constant 3 : index
    %17 = vector.load %arg6[%c0_14, %c3] : memref<4x4xf32, #tpu.memory_space<vmem>>, vector<1x1xf32>
    %cst_15 = arith.constant dense<0.000000e+00> : vector<256xf32>
    %18 = vector.multi_reduction <add>, %16, %cst_15 [0] : vector<4x256xf32> to vector<256xf32>
    %19 = vector.shape_cast %18 : vector<256xf32> to vector<1x256xf32>
    %20 = vector.broadcast %17 : vector<1x1xf32> to vector<1x256xf32>
    %21 = arith.addf %19, %20 : vector<1x256xf32>
    %22 = arith.negf %21 : vector<1x256xf32>
    %23 = math.exp %22 : vector<1x256xf32>
    %cst_16 = arith.constant 1.000000e+00 : f32
    %24 = vector.broadcast %cst_16 : f32 to vector<1x256xf32>
    %25 = arith.addf %24, %23 : vector<1x256xf32>
    %26 = arith.divf %24, %25 : vector<1x256xf32>
    %27 = vector.broadcast %26 : vector<1x256xf32> to vector<4x256xf32>
    %28 = arith.mulf %3, %27 : vector<4x256xf32>
    %29 = tpu.concatenate %28, %5 in 0 : vector<4x256xf32>, vector<4x256xf32> -> vector<8x256xf32>
    %cst_17 = arith.constant 0.000000e+00 : f32
    %30 = vector.broadcast %cst_17 : f32 to vector<8x128xf32>
    %c0_18 = arith.constant 0 : index
    %c0_19 = arith.constant 0 : index
    %31 = vector.load %arg8[%c0_18, %c0_19] : memref<8x512xf32, #tpu.memory_space<vmem>>, vector<8x128xf32>
    tpu.vector_store %arg8[%c0_18, %c0_19], %30 {strides = array<i32>} : memref<8x512xf32, #tpu.memory_space<vmem>>, vector<8x128xf32>,
    %cst_20 = arith.constant 0.000000e+00 : f32
    %32 = vector.broadcast %cst_20 : f32 to vector<8x128xf32>
    %c0_21 = arith.constant 0 : index
    %c384 = arith.constant 384 : index
    %33 = vector.load %arg8[%c0_21, %c384] : memref<8x512xf32, #tpu.memory_space<vmem>>, vector<8x128xf32>
    tpu.vector_store %arg8[%c0_21, %c384], %32 {strides = array<i32>} : memref<8x512xf32, #tpu.memory_space<vmem>>, vector<8x128xf32>,
    %c0_22 = arith.constant 0 : index
    %c128 = arith.constant 128 : index
    %34 = vector.load %arg8[%c0_22, %c128] : memref<8x512xf32, #tpu.memory_space<vmem>>, vector<8x256xf32>
    tpu.vector_store %arg8[%c0_22, %c128], %29 {strides = array<i32>} : memref<8x512xf32, #tpu.memory_space<vmem>>, vector<8x256xf32>,
    %35 = tpu.iota {dimensions = array<i32: 1>} : vector<1x256xi32>
    %c16_i32 = arith.constant 16 : i32
    %c0_i32 = arith.constant 0 : i32
    %36 = arith.cmpi eq, %c16_i32, %c0_i32 : i32
    %c1_i32 = arith.constant 1 : i32
    %37 = arith.select %36, %c1_i32, %c16_i32 : i32
    %38 = vector.broadcast %37 : i32 to vector<1x256xi32>
    %39 = arith.remsi %35, %38 : vector<1x256xi32>
    %c0_i32_23 = arith.constant 0 : i32
    %40 = vector.broadcast %c0_i32_23 : i32 to vector<1x256xi32>
    %41 = arith.cmpi ne, %39, %40 : vector<1x256xi32>
    %c0_i32_24 = arith.constant 0 : i32
    %42 = vector.broadcast %c0_i32_24 : i32 to vector<1x256xi32>
    %43 = arith.cmpi slt, %39, %42 : vector<1x256xi32>
    %c0_i32_25 = arith.constant 0 : i32
    %44 = arith.cmpi slt, %37, %c0_i32_25 : i32
    %45 = vector.broadcast %44 : i1 to vector<1x256xi1>
    %46 = vector.broadcast %45 : vector<1x256xi1> to vector<1x256xi1>
    %47 = arith.xori %43, %46 : vector<1x256xi1>
    %48 = arith.andi %47, %41 : vector<1x256xi1>
    %49 = vector.broadcast %37 : i32 to vector<1x256xi32>
    %50 = arith.addi %39, %49 : vector<1x256xi32>
    %51 = arith.select %48, %50, %39 : vector<1x256xi1>, vector<1x256xi32>
    %c1_i32_26 = arith.constant 1 : i32
    %52 = vector.broadcast %c1_i32_26 : i32 to vector<1x256xi32>
    %53 = arith.cmpi sge, %51, %52 : vector<1x256xi32>
    %c14_i32 = arith.constant 14 : i32
    %54 = vector.broadcast %c14_i32 : i32 to vector<1x256xi32>
    %55 = arith.cmpi sle, %51, %54 : vector<1x256xi32>
    %c0_27 = arith.constant 0 : index
    %c111 = arith.constant 111 : index
    %56 = vector.load %arg8[%c0_27, %c111] : memref<8x512xf32, #tpu.memory_space<vmem>>, vector<8x256xf32>
    %cst_28 = arith.constant 0.000000e+00 : f32
    %57 = vector.shape_cast %53 : vector<1x256xi1> to vector<1x256xi1>
    %58 = vector.broadcast %57 : vector<1x256xi1> to vector<8x256xi1>
    %59 = vector.broadcast %cst_28 : f32 to vector<8x256xf32>
    %60 = arith.select %58, %56, %59 : vector<8x256xi1>, vector<8x256xf32>
    %c0_29 = arith.constant 0 : index
    %c112 = arith.constant 112 : index
    %61 = vector.load %arg8[%c0_29, %c112] : memref<8x512xf32, #tpu.memory_space<vmem>>, vector<8x256xf32>
    %c0_30 = arith.constant 0 : index
    %c113 = arith.constant 113 : index
    %62 = vector.load %arg8[%c0_30, %c113] : memref<8x512xf32, #tpu.memory_space<vmem>>, vector<8x256xf32>
    %cst_31 = arith.constant 0.000000e+00 : f32
    %63 = vector.shape_cast %55 : vector<1x256xi1> to vector<1x256xi1>
    %64 = vector.broadcast %63 : vector<1x256xi1> to vector<8x256xi1>
    %65 = vector.broadcast %cst_31 : f32 to vector<8x256xf32>
    %66 = arith.select %64, %62, %65 : vector<8x256xi1>, vector<8x256xf32>
    %c0_32 = arith.constant 0 : index
    %c127 = arith.constant 127 : index
    %67 = vector.load %arg8[%c0_32, %c127] : memref<8x512xf32, #tpu.memory_space<vmem>>, vector<8x256xf32>
    %cst_33 = arith.constant 0.000000e+00 : f32
    %68 = vector.shape_cast %53 : vector<1x256xi1> to vector<1x256xi1>
    %69 = vector.broadcast %68 : vector<1x256xi1> to vector<8x256xi1>
    %70 = vector.broadcast %cst_33 : f32 to vector<8x256xf32>
    %71 = arith.select %69, %67, %70 : vector<8x256xi1>, vector<8x256xf32>
    %c0_34 = arith.constant 0 : index
    %c128_35 = arith.constant 128 : index
    %72 = vector.load %arg8[%c0_34, %c128_35] : memref<8x512xf32, #tpu.memory_space<vmem>>, vector<8x256xf32>
    %c0_36 = arith.constant 0 : index
    %c129 = arith.constant 129 : index
    %73 = vector.load %arg8[%c0_36, %c129] : memref<8x512xf32, #tpu.memory_space<vmem>>, vector<8x256xf32>
    %cst_37 = arith.constant 0.000000e+00 : f32
    %74 = vector.shape_cast %55 : vector<1x256xi1> to vector<1x256xi1>
    %75 = vector.broadcast %74 : vector<1x256xi1> to vector<8x256xi1>
    %76 = vector.broadcast %cst_37 : f32 to vector<8x256xf32>
    %77 = arith.select %75, %73, %76 : vector<8x256xi1>, vector<8x256xf32>
    %c0_38 = arith.constant 0 : index
    %c143 = arith.constant 143 : index
    %78 = vector.load %arg8[%c0_38, %c143] : memref<8x512xf32, #tpu.memory_space<vmem>>, vector<8x256xf32>
    %cst_39 = arith.constant 0.000000e+00 : f32
    %79 = vector.shape_cast %53 : vector<1x256xi1> to vector<1x256xi1>
    %80 = vector.broadcast %79 : vector<1x256xi1> to vector<8x256xi1>
    %81 = vector.broadcast %cst_39 : f32 to vector<8x256xf32>
    %82 = arith.select %80, %78, %81 : vector<8x256xi1>, vector<8x256xf32>
    %c0_40 = arith.constant 0 : index
    %c144 = arith.constant 144 : index
    %83 = vector.load %arg8[%c0_40, %c144] : memref<8x512xf32, #tpu.memory_space<vmem>>, vector<8x256xf32>
    %c0_41 = arith.constant 0 : index
    %c145 = arith.constant 145 : index
    %84 = vector.load %arg8[%c0_41, %c145] : memref<8x512xf32, #tpu.memory_space<vmem>>, vector<8x256xf32>
    %cst_42 = arith.constant 0.000000e+00 : f32
    %85 = vector.shape_cast %55 : vector<1x256xi1> to vector<1x256xi1>
    %86 = vector.broadcast %85 : vector<1x256xi1> to vector<8x256xi1>
    %87 = vector.broadcast %cst_42 : f32 to vector<8x256xf32>
    %88 = arith.select %86, %84, %87 : vector<8x256xi1>, vector<8x256xf32>
    %89 = tpu.concatenate %60, %61, %66, %71, %72, %77, %82, %83, %88 in 0 : vector<8x256xf32>, vector<8x256xf32>, vector<8x256xf32>, vector<8x256xf32>, vector<8x256xf32>, vector<8x256xf32>, vector<8x256xf32>, vector<8x256xf32>, vector<8x256xf32> -> vector<72x256xf32>
    %c0_43 = arith.constant 0 : index
    %c0_44 = arith.constant 0 : index
    %90 = vector.load %arg5[%c0_43, %c0_44] : memref<4x72xf32, #tpu.memory_space<vmem>>, vector<4x72xf32>
    %cst_45 = arith.constant dense<0.000000e+00> : vector<4x256xf32>
    %91 = tpu.matmul %90, %89, %cst_45 {dimension_numbers = #tpu.dot_dimension_numbers<[1], [0], [0], [1], [0, 0, 1, 1], [], []>} : vector<4x72xf32>, vector<72x256xf32>, vector<4x256xf32> -> vector<4x256xf32>
    %c0_46 = arith.constant 0 : index
    %c1 = arith.constant 1 : index
    %92 = vector.load %arg6[%c0_46, %c1] : memref<4x4xf32, #tpu.memory_space<vmem>>, vector<4x1xf32>
    %93 = vector.broadcast %92 : vector<4x1xf32> to vector<4x256xf32>
    %94 = arith.addf %91, %93 : vector<4x256xf32>
    %cst_47 = arith.constant 0.000000e+00 : f32
    %95 = vector.broadcast %cst_47 : f32 to vector<4x256xf32>
    %96 = arith.maximumf %94, %95 : vector<4x256xf32>
    %c0_48 = arith.constant 0 : index
    %c0_49 = arith.constant 0 : index
    %c0_50 = arith.constant 0 : index
    %97 = vector.load %arg7[%c0_48, %c0_49, %c0_50] : memref<1x4x256xf32, #tpu.memory_space<vmem>>, vector<1x4x256xf32>
    %98 = vector.shape_cast %97 : vector<1x4x256xf32> to vector<4x256xf32>
    %99 = vector.shape_cast %96 : vector<4x256xf32> to vector<1x4x256xf32>
    tpu.vector_store %arg7[%c0_48, %c0_49, %c0_50], %99 {strides = array<i32>} : memref<1x4x256xf32, #tpu.memory_space<vmem>>, vector<1x4x256xf32>,
    return
  }
  func.func @transform_0(%arg0: i32) -> (i32, i32, i32) {
    %c0_i32 = arith.constant 0 : i32
    %c0_i32_0 = arith.constant 0 : i32
    %c0_i32_1 = arith.constant 0 : i32
    return %arg0, %c0_i32, %c0_i32_0 : i32, i32, i32
  }
  func.func @transform_1(%arg0: i32) -> (i32, i32, i32) {
    %c0_i32 = arith.constant 0 : i32
    %c0_i32_0 = arith.constant 0 : i32
    %c0_i32_1 = arith.constant 0 : i32
    return %arg0, %c0_i32, %c0_i32_0 : i32, i32, i32
  }
  func.func @transform_2(%arg0: i32) -> (i32, i32) {
    %c0_i32 = arith.constant 0 : i32
    %c0_i32_0 = arith.constant 0 : i32
    %c0_i32_1 = arith.constant 0 : i32
    return %c0_i32, %c0_i32_0 : i32, i32
  }
  func.func @transform_3(%arg0: i32) -> (i32, i32) {
    %c0_i32 = arith.constant 0 : i32
    %c0_i32_0 = arith.constant 0 : i32
    %c0_i32_1 = arith.constant 0 : i32
    return %c0_i32, %c0_i32_0 : i32, i32
  }
  func.func @transform_4(%arg0: i32) -> (i32, i32) {
    %c0_i32 = arith.constant 0 : i32
    %c0_i32_0 = arith.constant 0 : i32
    %c0_i32_1 = arith.constant 0 : i32
    return %c0_i32, %c0_i32_0 : i32, i32
  }
  func.func @transform_5(%arg0: i32) -> (i32, i32) {
    %c0_i32 = arith.constant 0 : i32
    %c0_i32_0 = arith.constant 0 : i32
    %c0_i32_1 = arith.constant 0 : i32
    return %c0_i32, %c0_i32_0 : i32, i32
  }
  func.func @transform_6(%arg0: i32) -> (i32, i32, i32) {
    %c0_i32 = arith.constant 0 : i32
    %c0_i32_0 = arith.constant 0 : i32
    %c0_i32_1 = arith.constant 0 : i32
    return %arg0, %c0_i32, %c0_i32_0 : i32, i32, i32
  }
}

</mosaic_0001>

<llo_original>
// kernel: forward.1
$region0: #{forward.1}
  #allocation0 [shape = 'u32[]', space=smem, size = 0x4, offset = 0x4, fixed_abs, tag = 'smem constant byte address 0x4 - core index']
  #allocation1 [shape = 'u32[144,128]{1,0:T(1,128)}', space=vmem, size = 0x12000, scoped, tag = 'internal scratch']
  #allocation2 [shape = 'f32[8,512]{1,0:T(8,128)}', space=vmem, size = 0x4000, scoped, tag = 'scratch operand']
  %s0 = inlined_call_operand.vmem [shape: f32[2,4,64], index: 0, kind: input, shape index: {}]
  %s1 = inlined_call_operand.vmem [shape: f32[2,4,256], index: 1, kind: input, shape index: {}]
  %s2 = inlined_call_operand.vmem [shape: f32[64,256], index: 2, kind: input, shape index: {}]
  %s3 = inlined_call_operand.vmem [shape: f32[4,8], index: 3, kind: input, shape index: {}]
  %s4 = inlined_call_operand.vmem [shape: f32[4,72], index: 4, kind: input, shape index: {}]
  %s5 = inlined_call_operand.vmem [shape: f32[4,4], index: 5, kind: input, shape index: {}]
  %s6 = inlined_call_operand.vmem [shape: f32[2,4,256], index: 6, kind: output, shape index: {}]
  %s7 = sld [smem:[#allocation0]]
  $region57: #{forward.1} parent=0
    _
  %s9 = ssub.s32 1, %s7
  %s10 = scalar_select 0, %s9, %s7
  loop: start=0, step=1, limit=4
  $region2: #{forward.1} parent=0 // loop_pre_header
    _
  $region3: #{forward.1} parent=0 // loop_header
    %s12 = sphi 0, %s16
    %p13 = scmp.ge.s32.totalorder %s12, 4
    %s22 = sphi 0, %s24
    %s25 = sphi 0, %s22
    %s26 = sphi 0, %s25
    %s42 = sphi 0, %s26
    %s48 = sphi 0, %s50
    %s51 = sphi 0, %s48
    %s52 = sphi 0, %s51
    %s68 = sphi 0, %s52
    %s72 = sphi 0, %s72
    %s74 = sphi 0, %s72
    %s75 = sphi 0, %s74
    %s89 = sphi 0, %s75
    %s93 = sphi 0, %s93
    %s95 = sphi 0, %s93
    %s96 = sphi 0, %s95
    %s110 = sphi 0, %s96
    %s114 = sphi 0, %s114
    %s116 = sphi 0, %s114
    %s117 = sphi 0, %s116
    %s131 = sphi 0, %s117
    %s135 = sphi 0, %s135
    %s137 = sphi 0, %s135
    %s138 = sphi 0, %s137
    %s152 = sphi 0, %s138
    %s158 = sphi 0, %s160
    %s161 = sphi 0, %s158
    %s162 = sphi 0, %s161
    %s178 = sphi 0, %s162
  $region4: #{forward.1} parent=0 // loop_header_branch
    %15 = sbr.rel (%p13) target = $region8
  $region5: #{forward.1} parent=0 // loop_body
    %s17 = ssub.s32 %s12, 1
    %s18 = ssub.s32 %s12, 2
    %s19 = sadd.s32 %s12, 1
    %s20 = ssub.s32 %s12, %s19
    %p21 = scmp.eq.s32.totalorder %s20, 0
    %s23 = sadd.s32 %s22, 1
    %s24 = scalar_select %p21, %s22, %s23
    %p27 = pneg %p21
    %p28 = scmp.eq.s32.totalorder %s12, 1
    %p29 = por %p27, %p28
    %p30 = scmp.ne.s32.totalorder %s22, %s25
    %p31 = scmp.eq.s32.totalorder %s12, 0
    %p32 = por %p30, %p31
    %p33 = scmp.ne.s32.totalorder %s22, %s25
    %p34 = scmp.eq.s32.totalorder %s17, 1
    %p35 = por %p33, %p34
    %p36 = scmp.ne.s32.totalorder %s25, %s26
    %p37 = scmp.eq.s32.totalorder %s17, 0
    %p38 = por %p36, %p37
    %p39 = scmp.ne.s32.totalorder %s25, %s26
    %p40 = scmp.eq.s32.totalorder %s18, 1
    %p41 = por %p39, %p40
    %p43 = scmp.ne.s32.totalorder %s26, %s42
    %p44 = scmp.eq.s32.totalorder %s18, 0
    %p45 = por %p43, %p44
    %s46 = ssub.s32 %s12, %s19
    %p47 = scmp.eq.s32.totalorder %s46, 0
    %s49 = sadd.s32 %s48, 1
    %s50 = scalar_select %p47, %s48, %s49
    %p53 = pneg %p47
    %p54 = scmp.eq.s32.totalorder %s12, 1
    %p55 = por %p53, %p54
    %p56 = scmp.ne.s32.totalorder %s48, %s51
    %p57 = scmp.eq.s32.totalorder %s12, 0
    %p58 = por %p56, %p57
    %p59 = scmp.ne.s32.totalorder %s48, %s51
    %p60 = scmp.eq.s32.totalorder %s17, 1
    %p61 = por %p59, %p60
    %p62 = scmp.ne.s32.totalorder %s51, %s52
    %p63 = scmp.eq.s32.totalorder %s17, 0
    %p64 = por %p62, %p63
    %p65 = scmp.ne.s32.totalorder %s51, %s52
    %p66 = scmp.eq.s32.totalorder %s18, 1
    %p67 = por %p65, %p66
    %p69 = scmp.ne.s32.totalorder %s52, %s68
    %p70 = scmp.eq.s32.totalorder %s18, 0
    %p71 = por %p69, %p70
    %s73 = sadd.s32 %s72, 1
    %p76 = scmp.eq.s32.totalorder %s12, 1
    %p77 = scmp.ne.s32.totalorder %s72, %s74
    %p78 = scmp.eq.s32.totalorder %s12, 0
    %p79 = por %p77, %p78
    %p80 = scmp.ne.s32.totalorder %s72, %s74
    %p81 = scmp.eq.s32.totalorder %s17, 1
    %p82 = por %p80, %p81
    %p83 = scmp.ne.s32.totalorder %s74, %s75
    %p84 = scmp.eq.s32.totalorder %s17, 0
    %p85 = por %p83, %p84
    %p86 = scmp.ne.s32.totalorder %s74, %s75
    %p87 = scmp.eq.s32.totalorder %s18, 1
    %p88 = por %p86, %p87
    %p90 = scmp.ne.s32.totalorder %s75, %s89
    %p91 = scmp.eq.s32.totalorder %s18, 0
    %p92 = por %p90, %p91
    %s94 = sadd.s32 %s93, 1
    %p97 = scmp.eq.s32.totalorder %s12, 1
    %p98 = scmp.ne.s32.totalorder %s93, %s95
    %p99 = scmp.eq.s32.totalorder %s12, 0
    %p100 = por %p98, %p99
    %p101 = scmp.ne.s32.totalorder %s93, %s95
    %p102 = scmp.eq.s32.totalorder %s17, 1
    %p103 = por %p101, %p102
    %p104 = scmp.ne.s32.totalorder %s95, %s96
    %p105 = scmp.eq.s32.totalorder %s17, 0
    %p106 = por %p104, %p105
    %p107 = scmp.ne.s32.totalorder %s95, %s96
    %p108 = scmp.eq.s32.totalorder %s18, 1
    %p109 = por %p107, %p108
    %p111 = scmp.ne.s32.totalorder %s96, %s110
    %p112 = scmp.eq.s32.totalorder %s18, 0
    %p113 = por %p111, %p112
    %s115 = sadd.s32 %s114, 1
    %p118 = scmp.eq.s32.totalorder %s12, 1
    %p119 = scmp.ne.s32.totalorder %s114, %s116
    %p120 = scmp.eq.s32.totalorder %s12, 0
    %p121 = por %p119, %p120
    %p122 = scmp.ne.s32.totalorder %s114, %s116
    %p123 = scmp.eq.s32.totalorder %s17, 1
    %p124 = por %p122, %p123
    %p125 = scmp.ne.s32.totalorder %s116, %s117
    %p126 = scmp.eq.s32.totalorder %s17, 0
    %p127 = por %p125, %p126
    %p128 = scmp.ne.s32.totalorder %s116, %s117
    %p129 = scmp.eq.s32.totalorder %s18, 1
    %p130 = por %p128, %p129
    %p132 = scmp.ne.s32.totalorder %s117, %s131
    %p133 = scmp.eq.s32.totalorder %s18, 0
    %p134 = por %p132, %p133
    %s136 = sadd.s32 %s135, 1
    %p139 = scmp.eq.s32.totalorder %s12, 1
    %p140 = scmp.ne.s32.totalorder %s135, %s137
    %p141 = scmp.eq.s32.totalorder %s12, 0
    %p142 = por %p140, %p141
    %p143 = scmp.ne.s32.totalorder %s135, %s137
    %p144 = scmp.eq.s32.totalorder %s17, 1
    %p145 = por %p143, %p144
    %p146 = scmp.ne.s32.totalorder %s137, %s138
    %p147 = scmp.eq.s32.totalorder %s17, 0
    %p148 = por %p146, %p147
    %p149 = scmp.ne.s32.totalorder %s137, %s138
    %p150 = scmp.eq.s32.totalorder %s18, 1
    %p151 = por %p149, %p150
    %p153 = scmp.ne.s32.totalorder %s138, %s152
    %p154 = scmp.eq.s32.totalorder %s18, 0
    %p155 = por %p153, %p154
    %s156 = ssub.s32 %s12, %s19
    %p157 = scmp.eq.s32.totalorder %s156, 0
    %s159 = sadd.s32 %s158, 1
    %s160 = scalar_select %p157, %s158, %s159
    %p163 = pneg %p157
    %p164 = scmp.eq.s32.totalorder %s12, 1
    %p165 = por %p163, %p164
    %p166 = scmp.ne.s32.totalorder %s158, %s161
    %p167 = scmp.eq.s32.totalorder %s12, 0
    %p168 = por %p166, %p167
    %p169 = scmp.ne.s32.totalorder %s158, %s161
    %p170 = scmp.eq.s32.totalorder %s17, 1
    %p171 = por %p169, %p170
    %p172 = scmp.ne.s32.totalorder %s161, %s162
    %p173 = scmp.eq.s32.totalorder %s17, 0
    %p174 = por %p172, %p173
    %p175 = scmp.ne.s32.totalorder %s161, %s162
    %p176 = scmp.eq.s32.totalorder %s18, 1
    %p177 = por %p175, %p176
    %p179 = scmp.ne.s32.totalorder %s162, %s178
    %p180 = scmp.eq.s32.totalorder %s18, 0
    %p181 = por %p179, %p180
    %p182 = scmp.le.s32.totalorder 1, %s12
    %p183 = scmp.lt.s32.totalorder %s12, 3
    %p184 = pnand %p182, %p183
    %p185 = pneg %p184
    // Predicated region
    $region9: #{forward.1} parent=5 // pred_check
      _
    $region10: #{forward.1} parent=5 // pred_check_branch
      %187 = sbr.rel (%p184) target = $region12
    $region11: #{forward.1} parent=5 // pred_region
      %s188 = ssub.s32 %s12, 1
      // Predicated region
      $region13: #{forward.1} parent=11 // pred_check
        %p189 = pneg %p85
      $region14: #{forward.1} parent=11 // pred_check_branch
        %191 = sbr.rel (%p189) target = $region16
      $region15: #{forward.1} parent=11 // pred_region
        _
      $region16: #{forward.1} parent=11 // pred_fallthru
        _
      // Predicated region
      $region17: #{forward.1} parent=11 // pred_check
        %p192 = pneg %p106
      $region18: #{forward.1} parent=11 // pred_check_branch
        %194 = sbr.rel (%p192) target = $region20
      $region19: #{forward.1} parent=11 // pred_region
        _
      $region20: #{forward.1} parent=11 // pred_fallthru
        _
      // Predicated region
      $region21: #{forward.1} parent=11 // pred_check
        %p195 = pneg %p127
      $region22: #{forward.1} parent=11 // pred_check_branch
        %197 = sbr.rel (%p195) target = $region24
      $region23: #{forward.1} parent=11 // pred_region
        _
      $region24: #{forward.1} parent=11 // pred_fallthru
        _
      // Predicated region
      $region25: #{forward.1} parent=11 // pred_check
        %p198 = pneg %p148
      $region26: #{forward.1} parent=11 // pred_check_branch
        %200 = sbr.rel (%p198) target = $region28
      $region27: #{forward.1} parent=11 // pred_region
        _
      $region28: #{forward.1} parent=11 // pred_fallthru
        _
    $region12: #{forward.1} parent=5 // pred_fallthru
      _
    %p201 = scmp.lt.s32.totalorder %s12, 2
    // Predicated region
    $region29: #{forward.1} parent=5 // pred_check
      %p202 = pneg %p201
    $region30: #{forward.1} parent=5 // pred_check_branch
      %204 = sbr.rel (%p202) target = $region32
    $region31: #{forward.1} parent=5 // pred_region
      // Predicated region
      $region33: #{forward.1} parent=31 // pred_check
        %p205 = pneg %p32
      $region34: #{forward.1} parent=31 // pred_check_branch
        %207 = sbr.rel (%p205) target = $region36
      $region35: #{forward.1} parent=31 // pred_region
        %p208 = scmp.lt.s32.totalorder %s12, 1
        %s209 = scalar_select %p208, %s12, 1
        %s210 = smul.addr %s209, 4
        %s211 = scalar_lea.vmem %s0, %s210
      $region36: #{forward.1} parent=31 // pred_fallthru
        _
      // Predicated region
      $region37: #{forward.1} parent=31 // pred_check
        %p212 = pneg %p58
      $region38: #{forward.1} parent=31 // pred_check_branch
        %214 = sbr.rel (%p212) target = $region40
      $region39: #{forward.1} parent=31 // pred_region
        %p215 = scmp.lt.s32.totalorder %s12, 1
        %s216 = scalar_select %p215, %s12, 1
        %s217 = smul.addr %s216, 2
        %s218 = smul.addr %s217, 4
        %s219 = scalar_lea.vmem %s1, %s218
      $region40: #{forward.1} parent=31 // pred_fallthru
        _
    $region32: #{forward.1} parent=5 // pred_fallthru
      _
    %p220 = scmp.le.s32.totalorder 1, %s12
    %p221 = scmp.lt.s32.totalorder %s12, 3
    %p222 = pnand %p220, %p221
    %p223 = pneg %p222
    // Predicated region
    $region41: #{forward.1} parent=5 // pred_check
      _
    $region42: #{forward.1} parent=5 // pred_check_branch
      %225 = sbr.rel (%p222) target = $region44
    $region43: #{forward.1} parent=5 // pred_region
      %s226 = ssub.s32 %s12, 1
      %p227 = scmp.lt.s32.totalorder %s17, 1
      %s228 = scalar_select %p227, %s17, 1
      %s229 = smul.addr %s228, 4
      %s230 = scalar_lea.vmem %s0, %s229
      %p231 = pneg %p38
      %p232 = pneg %p35
      %p233 = scmp.lt.s32.totalorder %s17, 1
      %s234 = scalar_select %p233, %s17, 1
      %s235 = smul.addr %s234, 2
      %s236 = smul.addr %s235, 4
      %s237 = scalar_lea.vmem %s1, %s236
      %p238 = pneg %p64
      %p239 = pneg %p61
      %p240 = pneg %p85
      %p241 = pneg %p82
      %p242 = pneg %p106
      %p243 = pneg %p103
      %p244 = pneg %p127
      %p245 = pneg %p124
      %p246 = pneg %p148
      %p247 = pneg %p145
      %p248 = pneg %p174
      %p249 = pneg %p171
      %p250 = scmp.lt.s32.totalorder %s17, 1
      %s251 = scalar_select %p250, %s17, 1
      %s252 = smul.addr %s251, 2
      %s253 = smul.addr %s252, 4
      %s254 = scalar_lea.vmem %s6, %s253
      %p255 = scmp.lt.s32.totalorder %s17, 1
      %s256 = scalar_select %p255, %s17, 1
      %s257 = smul.addr %s256, 4
      %s258 = scalar_lea.vmem %s0, %s257
      %p259 = scmp.lt.s32.totalorder %s17, 1
      %s260 = scalar_select %p259, %s17, 1
      %s261 = smul.addr %s260, 2
      %s262 = smul.addr %s261, 4
      %s263 = scalar_lea.vmem %s1, %s262
      %p264 = scmp.lt.s32.totalorder %s17, 1
      %s265 = scalar_select %p264, %s17, 1
      %s266 = smul.addr %s265, 2
      %s267 = smul.addr %s266, 4
      %s268 = scalar_lea.vmem %s6, %s267
      %v269 = vld [vmem:[%s258] sm:$0xf]
      %v270 = vld [vmem:[%s263] sm:$0xff]
      %v271 = vld [vmem:[%s2] sm:$0xff]
      %v272 = vld [vmem:[%s2 + $0x8] sm:$0xff]
      %v273 = vld [vmem:[%s2 + $0x10] sm:$0xff]
      %v274 = vld [vmem:[%s2 + $0x18] sm:$0xff]
      %v275 = vld [vmem:[%s2 + $0x20] sm:$0xff]
      %v276 = vld [vmem:[%s2 + $0x28] sm:$0xff]
      %v277 = vld [vmem:[%s2 + $0x30] sm:$0xff]
      %v278 = vld [vmem:[%s2 + $0x38] sm:$0xff]
      %v279 = vld [vmem:[%s2 + $0x40] sm:$0xff]
      %v280 = vld [vmem:[%s2 + $0x48] sm:$0xff]
      %v281 = vld [vmem:[%s2 + $0x50] sm:$0xff]
      %v282 = vld [vmem:[%s2 + $0x58] sm:$0xff]
      %v283 = vld [vmem:[%s2 + $0x60] sm:$0xff]
      %v284 = vld [vmem:[%s2 + $0x68] sm:$0xff]
      %v285 = vld [vmem:[%s2 + $0x70] sm:$0xff]
      %v286 = vld [vmem:[%s2 + $0x78] sm:$0xff]
      %vm287 = vcmask 523264
      %v289 = vsel %vm287, %v269, 0
      %291 = vmatprep.subr.mxu0 %v272
      %292 = vmatpush1.msra.mxu0 %v271
      %293 = vmatprep.subr.mxu0 %v274
      %294 = vmatpush1.msra.mxu0 %v273
      %295 = vmatprep.subr.mxu0 %v276
      %296 = vmatpush1.msra.mxu0 %v275
      %297 = vmatprep.subr.mxu0 %v278
      %298 = vmatpush1.msra.mxu0 %v277
      %299 = vmatprep.subr.mxu0 %v280
      %300 = vmatpush1.msra.mxu0 %v279
      %301 = vmatprep.subr.mxu0 %v282
      %302 = vmatpush1.msra.mxu0 %v281
      %303 = vmatprep.subr.mxu0 %v284
      %304 = vmatpush1.msra.mxu0 %v283
      %305 = vmatprep.subr.mxu0 %v286
      %306 = vmatpush1.msra.mxu0 %v285
      %307 = vmatprep.subr.mxu0 0.0
      %308 = vmatpush1.msra.mxu0 0.0
      %309 = vmatprep.subr.mxu0 0.0
      %310 = vmatpush1.msra.mxu0 0.0
      %311 = vmatprep.subr.mxu0 0.0
      %312 = vmatpush1.msra.mxu0 0.0
      %313 = vmatprep.subr.mxu0 0.0
      %314 = vmatpush1.msra.mxu0 0.0
      %315 = vmatprep.subr.mxu0 0.0
      %316 = vmatpush1.msra.mxu0 0.0
      %317 = vmatprep.subr.mxu0 0.0
      %318 = vmatpush1.msra.mxu0 0.0
      %319 = vmatprep.subr.mxu0 0.0
      %320 = vmatpush1.msra.mxu0 0.0
      %321 = vmatprep.subr.mxu0 0.0
      %322 = vmatpush1.msra.mxu0 0.0
      %323 = vmatprep.subr.mxu0 0.0
      %324 = vmatpush1.msra.mxu0 0.0
      %325 = vmatprep.subr.mxu0 0.0
      %326 = vmatpush1.msra.mxu0 0.0
      %327 = vmatprep.subr.mxu0 0.0
      %328 = vmatpush1.msra.mxu0 0.0
      %329 = vmatprep.subr.mxu0 0.0
      %330 = vmatpush1.msra.mxu0 0.0
      %331 = vmatprep.subr.mxu0 0.0
      %332 = vmatpush1.msra.mxu0 0.0
      %333 = vmatprep.subr.mxu0 0.0
      %334 = vmatpush1.msra.mxu0 0.0
      %335 = vmatprep.subr.mxu0 0.0
      %336 = vmatpush1.msra.mxu0 0.0
      %337 = vmatprep.subr.mxu0 0.0
      %338 = vmatpush1.msra.mxu0 0.0
      %339 = vmatprep.subr.mxu0 0.0
      %340 = vmatpush1.msra.mxu0 0.0
      %341 = vmatprep.subr.mxu0 0.0
      %342 = vmatpush1.msra.mxu0 0.0
      %343 = vmatprep.subr.mxu0 0.0
      %344 = vmatpush1.msra.mxu0 0.0
      %345 = vmatprep.subr.mxu0 0.0
      %346 = vmatpush1.msra.mxu0 0.0
      %347 = vmatprep.subr.mxu0 0.0
      %348 = vmatpush1.msra.mxu0 0.0
      %349 = vmatprep.subr.mxu0 0.0
      %350 = vmatpush1.msra.mxu0 0.0
      %351 = vmatprep.subr.mxu0 0.0
      %352 = vmatpush1.msra.mxu0 0.0
      %353 = vmatprep.subr.mxu0 0.0
      %354 = vmatpush1.msra.mxu0 0.0
      %355 = vmatprep.mubr.f32.mxu0 0.0
      %356 = vmatmul.mubr.f32.gmra.mrb[0].mxu0 %v289
      %v357 = vpop.f32.mrb[0].mxu0
      %v358 = vadd.f32 0.0, %v357
      %v359 = vpop.f32.mrb[0].mxu0
      %v360 = vadd.f32 0.0, %v359
      %361 = vdwg.mxu0
      %v363 = vcombine.low %v270, %v270
      %vm365 = vcmask 1043456
      %v366 = vsel %vm365, %v358, %v363
      %v367 = vsel %vm365, %v360, %v270
      %v368 = vld [vmem:[%s3] sm:$0xf]
      %v369 = vld [vmem:[%s5] sm:$0xf]
      %371 = vset.pattern.permute.xlu0 0
      %372 = vperm.xlu0 %371, %v369
      %v373 = vpop.permute.xlu0 %372
      %vm375 = vcmask 64512
      %v377 = vsel %vm375, %v368, 0
      %379 = vmatprep.subr.mxu0 %v367
      %380 = vmatpush1.msra.mxu0 %v366
      %381 = vmatprep.subr.mxu0 0.0
      %382 = vmatpush1.msra.mxu0 0.0
      %383 = vmatprep.subr.mxu0 0.0
      %384 = vmatpush1.msra.mxu0 0.0
      %385 = vmatprep.subr.mxu0 0.0
      %386 = vmatpush1.msra.mxu0 0.0
      %387 = vmatprep.subr.mxu0 0.0
      %388 = vmatpush1.msra.mxu0 0.0
      %389 = vmatprep.subr.mxu0 0.0
      %390 = vmatpush1.msra.mxu0 0.0
      %391 = vmatprep.subr.mxu0 0.0
      %392 = vmatpush1.msra.mxu0 0.0
      %393 = vmatprep.subr.mxu0 0.0
      %394 = vmatpush1.msra.mxu0 0.0
      %395 = vmatprep.subr.mxu0 0.0
      %396 = vmatpush1.msra.mxu0 0.0
      %397 = vmatprep.subr.mxu0 0.0
      %398 = vmatpush1.msra.mxu0 0.0
      %399 = vmatprep.subr.mxu0 0.0
      %400 = vmatpush1.msra.mxu0 0.0
      %401 = vmatprep.subr.mxu0 0.0
      %402 = vmatpush1.msra.mxu0 0.0
      %403 = vmatprep.subr.mxu0 0.0
      %404 = vmatpush1.msra.mxu0 0.0
      %405 = vmatprep.subr.mxu0 0.0
      %406 = vmatpush1.msra.mxu0 0.0
      %407 = vmatprep.subr.mxu0 0.0
      %408 = vmatpush1.msra.mxu0 0.0
      %409 = vmatprep.subr.mxu0 0.0
      %410 = vmatpush1.msra.mxu0 0.0
      %411 = vmatprep.subr.mxu0 0.0
      %412 = vmatpush1.msra.mxu0 0.0
      %413 = vmatprep.subr.mxu0 0.0
      %414 = vmatpush1.msra.mxu0 0.0
      %415 = vmatprep.subr.mxu0 0.0
      %416 = vmatpush1.msra.mxu0 0.0
      %417 = vmatprep.subr.mxu0 0.0
      %418 = vmatpush1.msra.mxu0 0.0
      %419 = vmatprep.subr.mxu0 0.0
      %420 = vmatpush1.msra.mxu0 0.0
      %421 = vmatprep.subr.mxu0 0.0
      %422 = vmatpush1.msra.mxu0 0.0
      %423 = vmatprep.subr.mxu0 0.0
      %424 = vmatpush1.msra.mxu0 0.0
      %425 = vmatprep.subr.mxu0 0.0
      %426 = vmatpush1.msra.mxu0 0.0
      %427 = vmatprep.subr.mxu0 0.0
      %428 = vmatpush1.msra.mxu0 0.0
      %429 = vmatprep.subr.mxu0 0.0
      %430 = vmatpush1.msra.mxu0 0.0
      %431 = vmatprep.subr.mxu0 0.0
      %432 = vmatpush1.msra.mxu0 0.0
      %433 = vmatprep.subr.mxu0 0.0
      %434 = vmatpush1.msra.mxu0 0.0
      %435 = vmatprep.subr.mxu0 0.0
      %436 = vmatpush1.msra.mxu0 0.0
      %437 = vmatprep.subr.mxu0 0.0
      %438 = vmatpush1.msra.mxu0 0.0
      %439 = vmatprep.subr.mxu0 0.0
      %440 = vmatpush1.msra.mxu0 0.0
      %441 = vmatprep.subr.mxu0 0.0
      %442 = vmatpush1.msra.mxu0 0.0
      %443 = vmatprep.mubr.f32.mxu0 0.0
      %444 = vmatmul.mubr.f32.gmra.mrb[0].mxu0 %v377
      %v445 = vpop.f32.mrb[0].mxu0
      %v446 = vadd.f32 %v373, %v445
      %v447 = vpop.f32.mrb[0].mxu0
      %v448 = vadd.f32 %v373, %v447
      %449 = vdwg.mxu0
      %v450 = vmax.f32 %v446, 0.0
      %v451 = vmax.f32 %v448, 0.0
      %452 = vset.pattern.permute.xlu0 2
      %453 = vperm.xlu0 %452, %v369
      %v454 = vpop.permute.xlu0 %453
      %v456 = vmul.f32 %v450, %v454
      %v457 = vmul.f32 %v451, %v454
      %v458 = vld [vmem:[%s5] sm:$0x1]
      %v459 = vsel %vm365, %v456, 0.0
      %v460 = vrot.slane %v459, 4
      %v461 = vadd.f32 %v459, %v460
      %v462 = vrot.slane %v461, 2
      %v463 = vadd.f32 %v461, %v462
      %v464 = vrot.slane %v463, 1
      %v465 = vadd.f32 %v463, %v464
      %v466 = vsel %vm365, %v457, 0.0
      %v467 = vrot.slane %v466, 4
      %v468 = vadd.f32 %v466, %v467
      %v469 = vrot.slane %v468, 2
      %v470 = vadd.f32 %v468, %v469
      %v471 = vrot.slane %v470, 1
      %v472 = vadd.f32 %v470, %v471
      %474 = vset.pattern.permute.xlu0 3
      %475 = vperm.xlu0 %474, %v458
      %v476 = vpop.permute.xlu0 %475
      %v478 = vadd.f32 %v465, %v476
      %v479 = vadd.f32 %v472, %v476
      %v480 = vxor.u32 %v478, 2147483648
      %v481 = vxor.u32 %v479, 2147483648
      %v482 = vmul.f32 %v480, 1.442695
      %v483 = vpow.pop %v482
      %v484 = vmul.f32 %v481, 1.442695
      %v485 = vpow.pop %v484
      %v486 = vadd.f32 %v483, 1.0
      %v487 = vadd.f32 %v485, 1.0
      %v488 = vrcp.pop %v486
      %v489 = vmul.f32 1.0, %v488
      %v490 = vrcp.pop %v487
      %v491 = vmul.f32 1.0, %v490
      %v492 = vlaneseq
      %v493 = vshrl.u32 %v492, 7
      %v494 = vsub.s32 0, %v493
      %v495 = vrot.slane %v489, %v494
      %v496 = vlaneseq
      %v497 = vshrl.u32 %v496, 7
      %v498 = vsub.s32 0, %v497
      %v499 = vrot.slane %v491, %v498
      %v502 = vcombine.low %v495, %v499
      %v504 = vmul.f32 %v270, %v502
      %v506 = vcombine.high %v504, %v504
      %v510 = vrot.slane %v358, 4
      %v511 = vrot.slane %v360, 4
      %v514 = vsel %vm365, %v504, %v510
      %v515 = vsel %vm365, %v506, %v511
      %516 = vst [vmem:[#allocation2] sm:$0xff] 0.0
      %517 = vst [vmem:[#allocation2 + $0x18] sm:$0xff] 0.0
      %518 = vst [vmem:[#allocation2 + $0x8] sm:$0xff] %v514
      %519 = vst [vmem:[#allocation2 + $0x10] sm:$0xff] %v515
      %v520 = vlaneseq
      %v521 = vand.u32 %v520, 127
      %v522 = vadd.s32 %v521, 128
      %vm523 = vcmp.lt.s32.totalorder %v521, 0
      %v524 = vsub.s32 0, %v521
      %v525 = vsel %vm523, %v524, %v521
      %v526 = vshrl.u32 %v525, 4
      %v527 = vand.u32 %v525, 15
      %v528 = vsub.s32 0, %v527
      %v529 = vsel %vm523, %v528, %v527
      %vm530 = vcmp.lt.s32.totalorder %v522, 0
      %v531 = vsub.s32 0, %v522
      %v532 = vsel %vm530, %v531, %v522
      %v533 = vshrl.u32 %v532, 4
      %v534 = vand.u32 %v532, 15
      %v535 = vsub.s32 0, %v534
      %v536 = vsel %vm530, %v535, %v534
      %vm537 = vcmp.ne.s32.totalorder %v529, 0
      %vm538 = vcmp.ne.s32.totalorder %v536, 0
      %vm539 = vcmp.lt.s32.totalorder %v529, 0
      %vm540 = vcmp.lt.s32.totalorder %v536, 0
      %vm541 = vmand %vm539, %vm537
      %vm542 = vmand %vm540, %vm538
      %v543 = vadd.s32 %v529, 16
      %v544 = vadd.s32 %v536, 16
      %v545 = vsel %vm541, %v543, %v529
      %v546 = vsel %vm542, %v544, %v536
      %vm547 = vcmp.ge.s32.totalorder %v545, 1
      %vm548 = vcmp.ge.s32.totalorder %v546, 1
      %vm549 = vcmp.le.s32.totalorder %v545, 14
      %vm550 = vcmp.le.s32.totalorder %v546, 14
      %v551 = vld [vmem:[#allocation2] sm:$0xff]
      %v552 = vld [vmem:[#allocation2 + $0x8] sm:$0xff]
      %v553 = vld [vmem:[#allocation2 + $0x10] sm:$0xff]
      %v554 = vsel %vm547, 1, 0
      %v555 = vsel %vm548, 1, 0
      %vm556 = vcmp.eq.s32.totalorder %v554, 1
      %vm557 = vcmp.eq.s32.totalorder %v555, 1
      %561 = vrot.lane.b32.xlu0 %v551, 17
      %v562 = vpop.permute.xlu0 %561
      %563 = vrot.lane.b32.xlu0 %v552, 17
      %v564 = vpop.permute.xlu0 %563
      %565 = vrot.lane.b32.xlu0 %v553, 17
      %v566 = vpop.permute.xlu0 %565
      %vm567 = vcmask 138240
      %v568 = vsel %vm567, %v562, %v564
      %v569 = vsel %vm567, %v564, %v566
      %v572 = vsel %vm556, %v568, 0.0
      %v573 = vsel %vm557, %v569, 0.0
      %v574 = vsel %vm549, 1, 0
      %v575 = vsel %vm550, 1, 0
      %vm576 = vcmp.eq.s32.totalorder %v574, 1
      %vm577 = vcmp.eq.s32.totalorder %v575, 1
      %578 = vrot.lane.b32.xlu0 %v551, 15
      %v579 = vpop.permute.xlu0 %578
      %580 = vrot.lane.b32.xlu0 %v552, 15
      %v581 = vpop.permute.xlu0 %580
      %582 = vrot.lane.b32.xlu0 %v553, 15
      %v583 = vpop.permute.xlu0 %582
      %vm584 = vcmask 121856
      %v585 = vsel %vm584, %v579, %v581
      %v586 = vsel %vm584, %v581, %v583
      %v589 = vsel %vm576, %v585, 0.0
      %v590 = vsel %vm577, %v586, 0.0
      %591 = vrot.lane.b32.xlu0 %v551, 1
      %v592 = vpop.permute.xlu0 %591
      %593 = vrot.lane.b32.xlu0 %v552, 1
      %v594 = vpop.permute.xlu0 %593
      %595 = vrot.lane.b32.xlu0 %v553, 1
      %v596 = vpop.permute.xlu0 %595
      %vm597 = vcmask 7168
      %v598 = vsel %vm597, %v592, %v594
      %v599 = vsel %vm597, %v594, %v596
      %v602 = vsel %vm556, %v598, 0.0
      %v603 = vsel %vm557, %v599, 0.0
      %v604 = vld [vmem:[#allocation2 + $0x8] sm:$0xff]
      %v605 = vld [vmem:[#allocation2 + $0x10] sm:$0xff]
      %v606 = vld [vmem:[#allocation2 + $0x18] sm:$0xff]
      %610 = vrot.lane.b32.xlu0 %v604, 127
      %v611 = vpop.permute.xlu0 %610
      %612 = vrot.lane.b32.xlu0 %v605, 127
      %v613 = vpop.permute.xlu0 %612
      %614 = vrot.lane.b32.xlu0 %v606, 127
      %v615 = vpop.permute.xlu0 %614
      %vm616 = vcmask 1039360
      %v617 = vsel %vm616, %v611, %v613
      %v618 = vsel %vm616, %v613, %v615
      %v621 = vsel %vm576, %v617, 0.0
      %v622 = vsel %vm577, %v618, 0.0
      %623 = vrot.lane.b32.xlu0 %v604, 113
      %v624 = vpop.permute.xlu0 %623
      %625 = vrot.lane.b32.xlu0 %v605, 113
      %v626 = vpop.permute.xlu0 %625
      %627 = vrot.lane.b32.xlu0 %v606, 113
      %v628 = vpop.permute.xlu0 %627
      %vm629 = vcmask 924672
      %v630 = vsel %vm629, %v624, %v626
      %v631 = vsel %vm629, %v626, %v628
      %v634 = vsel %vm556, %v630, 0.0
      %v635 = vsel %vm557, %v631, 0.0
      %636 = vrot.lane.b32.xlu0 %v604, 111
      %v637 = vpop.permute.xlu0 %636
      %638 = vrot.lane.b32.xlu0 %v605, 111
      %v639 = vpop.permute.xlu0 %638
      %640 = vrot.lane.b32.xlu0 %v606, 111
      %v641 = vpop.permute.xlu0 %640
      %vm642 = vcmask 908288
      %v643 = vsel %vm642, %v637, %v639
      %v644 = vsel %vm642, %v639, %v641
      %v647 = vsel %vm576, %v643, 0.0
      %v648 = vsel %vm577, %v644, 0.0
      %649 = vrot.lane.b32.xlu0 %v551, 16
      %v650 = vpop.permute.xlu0 %649
      %651 = vrot.lane.b32.xlu0 %v552, 16
      %v652 = vpop.permute.xlu0 %651
      %653 = vrot.lane.b32.xlu0 %v553, 16
      %v654 = vpop.permute.xlu0 %653
      %vm655 = vcmask 130048
      %v656 = vsel %vm655, %v650, %v652
      %v657 = vsel %vm655, %v652, %v654
      %660 = vrot.lane.b32.xlu0 %v604, 112
      %v661 = vpop.permute.xlu0 %660
      %662 = vrot.lane.b32.xlu0 %v605, 112
      %v663 = vpop.permute.xlu0 %662
      %664 = vrot.lane.b32.xlu0 %v606, 112
      %v665 = vpop.permute.xlu0 %664
      %vm666 = vcmask 916480
      %v667 = vsel %vm666, %v661, %v663
      %v668 = vsel %vm666, %v663, %v665
      %v671 = vld [vmem:[%s4] sm:$0xf]
      %v672 = vld [vmem:[%s5] sm:$0xf]
      %674 = vset.pattern.permute.xlu0 1
      %675 = vperm.xlu0 %674, %v672
      %v676 = vpop.permute.xlu0 %675
      %vm678 = vcmask 588800
      %v680 = vsel %vm678, %v671, 0
      %682 = vmatprep.subr.mxu0 %v573
      %683 = vmatpush1.msra.mxu0 %v572
      %684 = vmatprep.subr.mxu0 %v657
      %685 = vmatpush1.msra.mxu0 %v656
      %686 = vmatprep.subr.mxu0 %v590
      %687 = vmatpush1.msra.mxu0 %v589
      %688 = vmatprep.subr.mxu0 %v603
      %689 = vmatpush1.msra.mxu0 %v602
      %690 = vmatprep.subr.mxu0 %v553
      %691 = vmatpush1.msra.mxu0 %v552
      %692 = vmatprep.subr.mxu0 %v622
      %693 = vmatpush1.msra.mxu0 %v621
      %694 = vmatprep.subr.mxu0 %v635
      %695 = vmatpush1.msra.mxu0 %v634
      %696 = vmatprep.subr.mxu0 %v668
      %697 = vmatpush1.msra.mxu0 %v667
      %698 = vmatprep.subr.mxu0 %v648
      %699 = vmatpush1.msra.mxu0 %v647
      %700 = vmatprep.subr.mxu0 0.0
      %701 = vmatpush1.msra.mxu0 0.0
      %702 = vmatprep.subr.mxu0 0.0
      %703 = vmatpush1.msra.mxu0 0.0
      %704 = vmatprep.subr.mxu0 0.0
      %705 = vmatpush1.msra.mxu0 0.0
      %706 = vmatprep.subr.mxu0 0.0
      %707 = vmatpush1.msra.mxu0 0.0
      %708 = vmatprep.subr.mxu0 0.0
      %709 = vmatpush1.msra.mxu0 0.0
      %710 = vmatprep.subr.mxu0 0.0
      %711 = vmatpush1.msra.mxu0 0.0
      %712 = vmatprep.subr.mxu0 0.0
      %713 = vmatpush1.msra.mxu0 0.0
      %714 = vmatprep.subr.mxu0 0.0
      %715 = vmatpush1.msra.mxu0 0.0
      %716 = vmatprep.subr.mxu0 0.0
      %717 = vmatpush1.msra.mxu0 0.0
      %718 = vmatprep.subr.mxu0 0.0
      %719 = vmatpush1.msra.mxu0 0.0
      %720 = vmatprep.subr.mxu0 0.0
      %721 = vmatpush1.msra.mxu0 0.0
      %722 = vmatprep.subr.mxu0 0.0
      %723 = vmatpush1.msra.mxu0 0.0
      %724 = vmatprep.subr.mxu0 0.0
      %725 = vmatpush1.msra.mxu0 0.0
      %726 = vmatprep.subr.mxu0 0.0
      %727 = vmatpush1.msra.mxu0 0.0
      %728 = vmatprep.subr.mxu0 0.0
      %729 = vmatpush1.msra.mxu0 0.0
      %730 = vmatprep.subr.mxu0 0.0
      %731 = vmatpush1.msra.mxu0 0.0
      %732 = vmatprep.subr.mxu0 0.0
      %733 = vmatpush1.msra.mxu0 0.0
      %734 = vmatprep.subr.mxu0 0.0
      %735 = vmatpush1.msra.mxu0 0.0
      %736 = vmatprep.subr.mxu0 0.0
      %737 = vmatpush1.msra.mxu0 0.0
      %738 = vmatprep.subr.mxu0 0.0
      %739 = vmatpush1.msra.mxu0 0.0
      %740 = vmatprep.subr.mxu0 0.0
      %741 = vmatpush1.msra.mxu0 0.0
      %742 = vmatprep.subr.mxu0 0.0
      %743 = vmatpush1.msra.mxu0 0.0
      %744 = vmatprep.subr.mxu0 0.0
      %745 = vmatpush1.msra.mxu0 0.0
      %746 = vmatprep.mubr.f32.mxu0 0.0
      %747 = vmatmul.mubr.f32.gmra.mrb[0].mxu0 %v680
      %v748 = vpop.f32.mrb[0].mxu0
      %v749 = vadd.f32 %v676, %v748
      %v750 = vpop.f32.mrb[0].mxu0
      %v751 = vadd.f32 %v676, %v750
      %752 = vdwg.mxu0
      %v753 = vmax.f32 %v749, 0.0
      %v754 = vmax.f32 %v751, 0.0
      %v757 = vcombine.low %v753, %v754
      %759 = vst [vmem:[%s268] sm:$0xff] %v757
      %p760 = scmp.lt.s32.totalorder %s17, 1
      %s761 = scalar_select %p760, %s17, 1
      %s762 = smul.addr %s761, 2
      %s763 = smul.addr %s762, 4
      %s764 = scalar_lea.vmem %s6, %s763
      // Predicated region
      $region45: #{forward.1} parent=43 // pred_check
        %p765 = pneg %p171
      $region46: #{forward.1} parent=43 // pred_check_branch
        %767 = sbr.rel (%p765) target = $region48
      $region47: #{forward.1} parent=43 // pred_region
        _
      $region48: #{forward.1} parent=43 // pred_fallthru
        _
    $region44: #{forward.1} parent=5 // pred_fallthru
      _
    %p768 = scmp.le.s32.totalorder 2, %s12
    // Predicated region
    $region49: #{forward.1} parent=5 // pred_check
      %p769 = pneg %p768
    $region50: #{forward.1} parent=5 // pred_check_branch
      %771 = sbr.rel (%p769) target = $region52
    $region51: #{forward.1} parent=5 // pred_region
      %s772 = ssub.s32 %s12, 2
      // Predicated region
      $region53: #{forward.1} parent=51 // pred_check
        %p773 = pneg %p177
      $region54: #{forward.1} parent=51 // pred_check_branch
        %775 = sbr.rel (%p773) target = $region56
      $region55: #{forward.1} parent=51 // pred_region
        %p776 = scmp.lt.s32.totalorder %s18, 1
        %s777 = scalar_select %p776, %s18, 1
        %s778 = smul.addr %s777, 2
        %s779 = smul.addr %s778, 4
        %s780 = scalar_lea.vmem %s6, %s779
      $region56: #{forward.1} parent=51 // pred_fallthru
        _
    $region52: #{forward.1} parent=5 // pred_fallthru
      _
  $region6: #{forward.1} parent=0 // loop_footer
    %s16 = sadd.s32 1, %s12
  $region7: #{forward.1} parent=0 // loop_footer_branch
    %11 = sbr.rel target = $region3
  $region8: #{forward.1} parent=0 // loop_exit
    _

</llo_original>
